<compile_context>
chip_gen: v7x
topology: tpu7x:2x2x1
jax: 0.10.0
libtpu: 0.0.40
codegen_flags: <defaults>
</compile_context>

<pallas_src>
import functools

import jax
import jax.numpy as jnp
from jax.experimental import pallas as pl
from jax.experimental.pallas import tpu as pltpu


# ----------------------------------------------------------------------------- helpers
def _round_up(a, b):
    return ((a + b - 1) // b) * b


def _cdiv(a, b):
    return -(-a // b)


def _gelu_new(x):
    # GPT-2 "gelu_new": 0.5*x*(1+tanh(sqrt(2/pi)*(x+0.044715*x^3))).
    # Runs in x.dtype (f32 or bf16 depending on generation).
    c = 0.7978845608028654  # sqrt(2/pi)
    return 0.5 * x * (1.0 + jnp.tanh(c * (x + 0.044715 * (x * x * x))))


def _tpu_hw_info():
    """Best-effort (VMEM capacity bytes, generation tag)."""
    vmem_cap = 64 << 20  # conservative default = v7x per-TensorCore VMEM
    try:
        vmem_cap = int(pltpu.get_tpu_info().vmem_capacity_bytes)
    except Exception:
        pass
    gen = "unknown"
    try:
        kind = jax.devices()[0].device_kind.lower()
        if "v5 lite" in kind or "v5e" in kind or "v5lite" in kind:
            gen = "v5e"
        elif "v6" in kind:
            gen = "v6e"
        elif "v7" in kind or "7x" in kind:
            gen = "v7x"
    except Exception:
        pass
    return vmem_cap, gen


def _gelu_dtype_for(gen, compute_dtype):
    # v6e/v7x VPU/EUP have bf16 datapaths; v5e (and unknown) keep the gelu chain in f32.
    if gen in ("v6e", "v7x") and jnp.dtype(compute_dtype).itemsize == 2:
        return compute_dtype
    return jnp.float32


def _pick_row_tile(M, t_target, row_align):
    t = max(row_align, (int(t_target) // row_align) * row_align)
    t = min(t, _round_up(M, row_align))
    # Megacore: prefer >= 2 row tiles so both TensorCores get work.
    if _cdiv(M, t) == 1 and M > 2 * row_align:
        t = _round_up(_cdiv(M, 2), row_align)
    return max(t, row_align)


def _largest_dividing_tile(total, target, align=128):
    """Largest multiple of `align` that divides `total` (a multiple of align) and is <= target."""
    best = align
    n = total // align
    for d in range(1, n + 1):
        if n % d == 0 and d * align <= target:
            best = d * align
    return best


# ----------------------------------------------------------------------------- kernels
def _mlp_resident_kernel(x_ref, wfc_ref, bfc_ref, wproj_ref, bproj_ref, o_ref,
                         *, compute_dtype, gelu_dtype):
    # Grid: (row tiles,).  Both weight matrices are fully VMEM-resident
    # (constant block index -> DMA'd once by the pipeliner).
    x = x_ref[...].astype(compute_dtype)
    h = jnp.dot(x, wfc_ref[...], preferred_element_type=jnp.float32)
    h = _gelu_new((h + bfc_ref[...]).astype(gelu_dtype))
    y = jnp.dot(h.astype(wproj_ref.dtype), wproj_ref[...],
                preferred_element_type=jnp.float32)
    # TODO(synk): resid_pdrop dropout is identity in eval mode; training-mode
    # stochastic dropout would use pltpu.prng_seed + pltpu.prng_random_bits.
    o_ref[...] = (y + bproj_ref[...]).astype(o_ref.dtype)


def _mlp_ksplit_kernel(x_ref, wfc_ref, bfc_ref, wproj_ref, bproj_ref, o_ref, acc_ref,
                       *, compute_dtype, gelu_dtype):
    # Grid: (row tiles, I tiles).  Axis 1 is the reduction over the intermediate dim.
    k = pl.program_id(1)

    @pl.when(k == 0)
    def _():
        acc_ref[...] = jnp.zeros_like(acc_ref)

    x = x_ref[...].astype(compute_dtype)
    h = jnp.dot(x, wfc_ref[...], preferred_element_type=jnp.float32)
    h = _gelu_new((h + bfc_ref[...]).astype(gelu_dtype))
    acc_ref[...] += jnp.dot(h.astype(wproj_ref.dtype), wproj_ref[...],
                            preferred_element_type=jnp.float32)

    @pl.when(k == pl.num_programs(1) - 1)
    def _():
        # TODO(synk): dropout identity (eval mode); see note in resident kernel.
        o_ref[...] = (acc_ref[...] + bproj_ref[...]).astype(o_ref.dtype)


# ----------------------------------------------------------------------------- wrapper
def prepare_gpt2_mlp_params(w_fc, b_fc, w_proj, b_proj, *, compute_dtype=jnp.bfloat16):
    """Cast + lane-pad the Conv1D weights ONCE (cache and reuse across calls)."""
    H, I = w_fc.shape
    H_pad = _round_up(H, 128)
    I_pad = _round_up(I, 128)
    wfc = jnp.pad(w_fc.astype(compute_dtype), ((0, H_pad - H), (0, I_pad - I)))
    wproj = jnp.pad(w_proj.astype(compute_dtype), ((0, I_pad - I), (0, H_pad - H)))
    bfc = jnp.pad(b_fc.astype(jnp.float32).reshape(1, I), ((0, 0), (0, I_pad - I)))
    bproj = jnp.pad(b_proj.astype(jnp.float32).reshape(1, H), ((0, 0), (0, H_pad - H)))
    return dict(wfc=wfc, bfc=bfc, wproj=wproj, bproj=bproj,
                H=H, I=I, H_pad=H_pad, I_pad=I_pad, compute_dtype=compute_dtype)


def gpt2_mlp_pallas(hidden_states, params, *, tm=None, ti=None):
    """hidden_states: [B, S, H]; params: output of prepare_gpt2_mlp_params."""
    B, S, H = hidden_states.shape
    assert H == params["H"], "hidden size mismatch vs prepared params"
    H_pad, I_pad = params["H_pad"], params["I_pad"]
    compute_dtype = params["compute_dtype"]
    cbytes = jnp.dtype(compute_dtype).itemsize
    M = B * S
    out_dtype = hidden_states.dtype
    xbytes = jnp.dtype(hidden_states.dtype).itemsize
    obytes = jnp.dtype(out_dtype).itemsize

    vmem_cap, gen = _tpu_hw_info()
    # Generation-aware usable-VMEM budget: ~100 MB on 128 MiB parts (v5e/v6e),
    # ~50 MB on 64 MiB parts (v7x); always leave headroom for Mosaic scratch.
    vmem_budget = max(32 << 20, min(int(vmem_cap * 0.8), vmem_cap - (12 << 20)))

    row_align = 16 if cbytes == 2 else 8
    gelu_dtype = _gelu_dtype_for(gen, compute_dtype)

    # ---------- Path 1: fully VMEM-resident weights (single grid axis) --------
    # Constant-index weight blocks are only DMA'd once, but the pipeliner still
    # double-buffers them, so budget 2 copies.
    # TODO(synk): pipeline_mode=pl.Buffered(1) on the constant-index specs would
    # halve this footprint (lets GPT-2 large stay resident on v7x).
    resident_w_bytes = 2 * 2 * H_pad * I_pad * cbytes + 2 * 4 * (I_pad + H_pad)

    def _resident_tile_bytes(tm_):
        return (2 * tm_ * H_pad * xbytes        # x row tile (double-buffered)
                + 2 * tm_ * H_pad * obytes      # out row tile (double-buffered)
                + tm_ * I_pad * (4 + cbytes)    # (tm, I) gelu intermediate
                + tm_ * H_pad * 4)              # (tm, H) f32 matmul result

    tm_res_target = int(tm) if tm is not None else 512

    resident = False
    tm_eff = None
    if resident_w_bytes < vmem_budget:
        t = max(row_align, (tm_res_target // row_align) * row_align)
        while t > row_align and resident_w_bytes + _resident_tile_bytes(t) > vmem_budget:
            t = max(row_align, ((t // 2) // row_align) * row_align)
        if resident_w_bytes + _resident_tile_bytes(t) <= vmem_budget:
            resident = True
            tm_eff = _pick_row_tile(M, t, row_align)

    # ---------- Path 2: k-split over the intermediate dim (f32 accumulator) ---
    if resident:
        ti_eff = I_pad
        kt = 1
    else:
        ti_target = int(ti) if ti is not None else 1024
        # Break-even row tiles for hiding weight streaming (peak_flops / HBM_BW):
        # v6e ~640 -> use 1024; v7x ~310 and 64 MiB VMEM -> 512; v5e ~240 -> 512.
        tm_ks_target = int(tm) if tm is not None else {"v6e": 1024, "v7x": 512, "v5e": 512}.get(gen, 512)
        tm_eff = _pick_row_tile(M, tm_ks_target, row_align)
        ti_eff = _largest_dividing_tile(I_pad, ti_target)

        def _ksplit_bytes(tm_, ti_):
            return (2 * tm_ * H_pad * xbytes
                    + 2 * tm_ * H_pad * obytes
                    + tm_ * H_pad * 4                 # f32 accumulator scratch
                    + 2 * H_pad * ti_ * cbytes        # c_fc sliver (double-buffered)
                    + 2 * ti_ * H_pad * cbytes        # c_proj sliver (double-buffered)
                    + tm_ * ti_ * (4 + cbytes)        # gelu intermediate
                    + 2 * 4 * (ti_ + H_pad))

        for _ in range(8):
            if _ksplit_bytes(tm_eff, ti_eff) <= vmem_budget:
                break
            if tm_eff > 128:
                tm_eff = max(row_align, ((tm_eff // 2) // row_align) * row_align)
            elif ti_eff > 256:
                ti_eff = _largest_dividing_tile(I_pad, max(128, ti_eff // 2))
            else:
                break
        kt = I_pad // ti_eff

    M_pad = _round_up(M, tm_eff)
    n_row_tiles = M_pad // tm_eff

    # x stays in its NATIVE dtype (cast to compute_dtype inside the kernel);
    # only zero-pad if the shape requires it.
    x2d = hidden_states.reshape(M, H)
    if (M_pad, H_pad) != (M, H):
        x2d = jnp.pad(x2d, ((0, M_pad - M), (0, H_pad - H)))

    # Corrected cost estimate: x read once; weights once (resident) or once per row tile.
    w_row_reads = 1 if resident else n_row_tiles
    cost = pl.CostEstimate(
        flops=int(4 * M_pad * H_pad * I_pad),            # two matmuls, 2*M*H*I each
        transcendentals=int(M_pad * I_pad),              # tanh in gelu_new
        bytes_accessed=int(M_pad * H_pad * xbytes
                           + w_row_reads * 2 * H_pad * I_pad * cbytes
                           + M_pad * H_pad * obytes),
    )

    cparams = pltpu.CompilerParams(
        dimension_semantics=("parallel",) if resident else ("parallel", "arbitrary"),
        vmem_limit_bytes=int(vmem_budget),
    )

    if resident:
        kernel = functools.partial(_mlp_resident_kernel,
                                   compute_dtype=compute_dtype, gelu_dtype=gelu_dtype)
        grid_spec = pltpu.PrefetchScalarGridSpec(
            num_scalar_prefetch=0,
            grid=(n_row_tiles,),
            in_specs=[
                pl.BlockSpec((tm_eff, H_pad), lambda i: (i, 0)),   # x row tile
                pl.BlockSpec((H_pad, I_pad), lambda i: (0, 0)),    # c_fc weight (resident)
                pl.BlockSpec((1, I_pad), lambda i: (0, 0)),        # c_fc bias
                pl.BlockSpec((I_pad, H_pad), lambda i: (0, 0)),    # c_proj weight (resident)
                pl.BlockSpec((1, H_pad), lambda i: (0, 0)),        # c_proj bias
            ],
            out_specs=pl.BlockSpec((tm_eff, H_pad), lambda i: (i, 0)),
        )
    else:
        kernel = functools.partial(_mlp_ksplit_kernel,
                                   compute_dtype=compute_dtype, gelu_dtype=gelu_dtype)
        grid_spec = pltpu.PrefetchScalarGridSpec(
            num_scalar_prefetch=0,
            grid=(n_row_tiles, kt),
            in_specs=[
                pl.BlockSpec((tm_eff, H_pad), lambda i, k: (i, 0)),   # x row tile
                pl.BlockSpec((H_pad, ti_eff), lambda i, k: (0, k)),   # c_fc weight sliver
                pl.BlockSpec((1, ti_eff), lambda i, k: (0, k)),       # c_fc bias sliver
                pl.BlockSpec((ti_eff, H_pad), lambda i, k: (k, 0)),   # c_proj weight sliver
                pl.BlockSpec((1, H_pad), lambda i, k: (0, 0)),        # c_proj bias
            ],
            out_specs=pl.BlockSpec((tm_eff, H_pad), lambda i, k: (i, 0)),
            scratch_shapes=[pltpu.VMEM((tm_eff, H_pad), jnp.float32)],
        )

    out2d = pl.pallas_call(
        kernel,
        out_shape=jax.ShapeDtypeStruct((M_pad, H_pad), out_dtype),
        grid_spec=grid_spec,
        compiler_params=cparams,
        cost_estimate=cost,
    )(x2d, params["wfc"], params["bfc"], params["wproj"], params["bproj"])

    return out2d[:M, :H].reshape(B, S, H)


def gpt2_mlp_pallas_raw(hidden_states, w_fc, b_fc, w_proj, b_proj,
                        *, compute_dtype=jnp.bfloat16, **kw):
    """Convenience wrapper matching the original call shape (prepares weights each call)."""
    params = prepare_gpt2_mlp_params(w_fc, b_fc, w_proj, b_proj, compute_dtype=compute_dtype)
    return gpt2_mlp_pallas(hidden_states, params, **kw)


# ----------------------------------------------------------------------------- reference
def _reference(hidden_states, w_fc, b_fc, w_proj, b_proj,
               *, compute_dtype=jnp.float32, gelu_dtype=jnp.float32):
    """Pure-JAX reference mirroring the kernel's precision pipeline."""
    B, S, H = hidden_states.shape
    x2 = hidden_states.reshape(-1, H).astype(compute_dtype)
    h = jnp.dot(x2, w_fc.astype(compute_dtype), preferred_element_type=jnp.float32)
    h = _gelu_new((h + b_fc.astype(jnp.float32)).astype(gelu_dtype))
    y = jnp.dot(h.astype(compute_dtype), w_proj.astype(compute_dtype),
                preferred_element_type=jnp.float32) + b_proj.astype(jnp.float32)
    return y.astype(hidden_states.dtype).reshape(B, S, H)


if __name__ == "__main__":
    # Small shapes consistent with the module: batch=2, seq=8, hidden=32,
    # intermediate_size = 4 * hidden = 128 (GPT-2 convention).
    B, S, H = 2, 8, 32
    I = 4 * H

    key = jax.random.PRNGKey(0)
    k_x, k_wfc, k_bfc, k_wproj, k_bproj = jax.random.split(key, 5)

    x = jax.random.normal(k_x, (B, S, H), dtype=jnp.float32)
    # Conv1D init in HF: weight ~ N(0, 0.02), bias = 0; keep deterministic here.
    w_fc = 0.02 * jax.random.normal(k_wfc, (H, I), dtype=jnp.float32)
    b_fc = 0.01 * jax.random.normal(k_bfc, (I,), dtype=jnp.float32)
    w_proj = 0.02 * jax.random.normal(k_wproj, (I, H), dtype=jnp.float32)
    b_proj = 0.01 * jax.random.normal(k_bproj, (H,), dtype=jnp.float32)

    # Prepare (cast + pad) the Conv1D weights ONCE; reuse across calls.
    params = prepare_gpt2_mlp_params(w_fc, b_fc, w_proj, b_proj, compute_dtype=jnp.bfloat16)

    out = gpt2_mlp_pallas(x, params)
    out = jax.block_until_ready(out)
    assert out.shape == (B, S, H)

    # Exact-pipeline reference (bf16 matmuls, f32 accumulation, same gelu dtype).
    _, gen = _tpu_hw_info()
    gelu_dtype = _gelu_dtype_for(gen, jnp.bfloat16)
    ref_pipe = _reference(x, w_fc, b_fc, w_proj, b_proj,
                          compute_dtype=jnp.bfloat16, gelu_dtype=gelu_dtype)
    assert jnp.allclose(out, ref_pipe, atol=2e-3, rtol=2e-2), "mismatch vs bf16 pipeline reference"

    # Full-f32 reference — looser tolerance (bf16 quantization only).
    ref_f32 = _reference(x, w_fc, b_fc, w_proj, b_proj)
    assert jnp.allclose(out, ref_f32, atol=2e-2, rtol=2e-2), "mismatch vs f32 reference"

    print("KERNEL_OK")
</pallas_src>

<mosaic_0001>
module attributes {stable_mosaic.version = 11 : i64} {
  func.func @_mlp_resident_kernel(%arg0: i32, %arg1: memref<16x128xf32, #tpu.memory_space<vmem>>, %arg2: memref<128x128xbf16, #tpu.memory_space<vmem>>, %arg3: memref<1x128xf32, #tpu.memory_space<vmem>>, %arg4: memref<128x128xbf16, #tpu.memory_space<vmem>>, %arg5: memref<1x128xf32, #tpu.memory_space<vmem>>, %arg6: memref<16x128xf32, #tpu.memory_space<vmem>>) attributes {dimension_semantics = [#tpu.dimension_semantics<parallel>], iteration_bounds = array<i64: 1>, scalar_prefetch = 0 : i64, scratch_operands = 0 : i64, tpu.core_type = #tpu.core_type<tc>, window_params = [{transform_indices = @transform_0, window_bounds = array<i64: 16, 128>}, {pipeline_mode = #tpu.pipeline_mode<synchronous>, transform_indices = @transform_1, window_bounds = array<i64: 128, 128>}, {pipeline_mode = #tpu.pipeline_mode<synchronous>, transform_indices = @transform_2, window_bounds = array<i64: 1, 128>}, {pipeline_mode = #tpu.pipeline_mode<synchronous>, transform_indices = @transform_3, window_bounds = array<i64: 128, 128>}, {pipeline_mode = #tpu.pipeline_mode<synchronous>, transform_indices = @transform_4, window_bounds = array<i64: 1, 128>}, {transform_indices = @transform_5, window_bounds = array<i64: 16, 128>}]} {
    %c0 = arith.constant 0 : index
    %c0_0 = arith.constant 0 : index
    %0 = vector.load %arg1[%c0, %c0_0] : memref<16x128xf32, #tpu.memory_space<vmem>>, vector<16x128xf32>
    %1 = arith.truncf %0 : vector<16x128xf32> to vector<16x128xbf16>
    %c0_1 = arith.constant 0 : index
    %c0_2 = arith.constant 0 : index
    %2 = vector.load %arg2[%c0_1, %c0_2] : memref<128x128xbf16, #tpu.memory_space<vmem>>, vector<128x128xbf16>
    %cst = arith.constant dense<0.000000e+00> : vector<16x128xf32>
    %3 = tpu.matmul %1, %2, %cst {dimension_numbers = #tpu.dot_dimension_numbers<[1], [0], [0], [1], [0, 0, 1, 1], [], []>} : vector<16x128xbf16>, vector<128x128xbf16>, vector<16x128xf32> -> vector<16x128xf32>
    %c0_3 = arith.constant 0 : index
    %c0_4 = arith.constant 0 : index
    %4 = vector.load %arg3[%c0_3, %c0_4] : memref<1x128xf32, #tpu.memory_space<vmem>>, vector<1x128xf32>
    %5 = vector.broadcast %4 : vector<1x128xf32> to vector<16x128xf32>
    %6 = arith.addf %3, %5 : vector<16x128xf32>
    %cst_5 = arith.constant 5.000000e-01 : f32
    %7 = vector.broadcast %cst_5 : f32 to vector<16x128xf32>
    %8 = arith.mulf %7, %6 : vector<16x128xf32>
    %9 = arith.mulf %6, %6 : vector<16x128xf32>
    %10 = arith.mulf %9, %6 : vector<16x128xf32>
    %cst_6 = arith.constant 4.471500e-02 : f32
    %11 = vector.broadcast %cst_6 : f32 to vector<16x128xf32>
    %12 = arith.mulf %11, %10 : vector<16x128xf32>
    %13 = arith.addf %6, %12 : vector<16x128xf32>
    %cst_7 = arith.constant 0.797884583 : f32
    %14 = vector.broadcast %cst_7 : f32 to vector<16x128xf32>
    %15 = arith.mulf %14, %13 : vector<16x128xf32>
    %16 = math.tanh %15 : vector<16x128xf32>
    %cst_8 = arith.constant 1.000000e+00 : f32
    %17 = vector.broadcast %cst_8 : f32 to vector<16x128xf32>
    %18 = arith.addf %17, %16 : vector<16x128xf32>
    %19 = arith.mulf %8, %18 : vector<16x128xf32>
    %20 = arith.truncf %19 : vector<16x128xf32> to vector<16x128xbf16>
    %c0_9 = arith.constant 0 : index
    %c0_10 = arith.constant 0 : index
    %21 = vector.load %arg4[%c0_9, %c0_10] : memref<128x128xbf16, #tpu.memory_space<vmem>>, vector<128x128xbf16>
    %cst_11 = arith.constant dense<0.000000e+00> : vector<16x128xf32>
    %22 = tpu.matmul %20, %21, %cst_11 {dimension_numbers = #tpu.dot_dimension_numbers<[1], [0], [0], [1], [0, 0, 1, 1], [], []>} : vector<16x128xbf16>, vector<128x128xbf16>, vector<16x128xf32> -> vector<16x128xf32>
    %c0_12 = arith.constant 0 : index
    %c0_13 = arith.constant 0 : index
    %23 = vector.load %arg5[%c0_12, %c0_13] : memref<1x128xf32, #tpu.memory_space<vmem>>, vector<1x128xf32>
    %24 = vector.broadcast %23 : vector<1x128xf32> to vector<16x128xf32>
    %25 = arith.addf %22, %24 : vector<16x128xf32>
    %c0_14 = arith.constant 0 : index
    %c0_15 = arith.constant 0 : index
    %26 = vector.load %arg6[%c0_14, %c0_15] : memref<16x128xf32, #tpu.memory_space<vmem>>, vector<16x128xf32>
    tpu.vector_store %arg6[%c0_14, %c0_15], %25 {strides = array<i32>} : memref<16x128xf32, #tpu.memory_space<vmem>>, vector<16x128xf32>,
    return
  }
  func.func @transform_0(%arg0: i32) -> (i32, i32) {
    %c0_i32 = arith.constant 0 : i32
    %c0_i32_0 = arith.constant 0 : i32
    return %arg0, %c0_i32 : i32, i32
  }
  func.func @transform_1(%arg0: i32) -> (i32, i32) {
    %c0_i32 = arith.constant 0 : i32
    %c0_i32_0 = arith.constant 0 : i32
    %c0_i32_1 = arith.constant 0 : i32
    return %c0_i32, %c0_i32_0 : i32, i32
  }
  func.func @transform_2(%arg0: i32) -> (i32, i32) {
    %c0_i32 = arith.constant 0 : i32
    %c0_i32_0 = arith.constant 0 : i32
    %c0_i32_1 = arith.constant 0 : i32
    return %c0_i32, %c0_i32_0 : i32, i32
  }
  func.func @transform_3(%arg0: i32) -> (i32, i32) {
    %c0_i32 = arith.constant 0 : i32
    %c0_i32_0 = arith.constant 0 : i32
    %c0_i32_1 = arith.constant 0 : i32
    return %c0_i32, %c0_i32_0 : i32, i32
  }
  func.func @transform_4(%arg0: i32) -> (i32, i32) {
    %c0_i32 = arith.constant 0 : i32
    %c0_i32_0 = arith.constant 0 : i32
    %c0_i32_1 = arith.constant 0 : i32
    return %c0_i32, %c0_i32_0 : i32, i32
  }
  func.func @transform_5(%arg0: i32) -> (i32, i32) {
    %c0_i32 = arith.constant 0 : i32
    %c0_i32_0 = arith.constant 0 : i32
    return %arg0, %c0_i32 : i32, i32
  }
}

</mosaic_0001>

<llo_original>
// kernel: tpu_custom_call.1
$region0: #{tpu_custom_call.1}
  #allocation0 [shape = 'u32[]', space=smem, size = 0x4, offset = 0x4, fixed_abs, tag = 'smem constant byte address 0x4 - core index']
  #allocation1 [shape = 'u32[144,128]{1,0:T(1,128)}', space=vmem, size = 0x12000, scoped, tag = 'internal scratch']
  %s0 = inlined_call_operand.hbm [shape: f32[16,128], index: 0, kind: input, shape index: {}]
  %s1 = inlined_call_operand.hbm [shape: bf16[128,128], index: 1, kind: input, shape index: {}]
  %s2 = inlined_call_operand.vmem [shape: f32[1,128], index: 2, kind: input, shape index: {}]
  %s3 = inlined_call_operand.hbm [shape: bf16[128,128], index: 3, kind: input, shape index: {}]
  %s4 = inlined_call_operand.vmem [shape: f32[1,128], index: 4, kind: input, shape index: {}]
  %s5 = inlined_call_operand.hbm [shape: f32[16,128], index: 5, kind: output, shape index: {}]
  %s6 = sld [smem:[#allocation0]]
  $region42: #{tpu_custom_call.1} parent=0
    _
  %s8 = ssub.s32 1, %s6
  %s9 = scalar_select 0, %s8, %s6
  $region1: #{tpu_custom_call.1} parent=0
    #allocation2 [shape = 'u8[8192]{0}', space=vmem, size = 0x2000, scoped, tag = 'input window, operand 0, single buffered']
    #allocation3 [shape = 's32[1]{0}', space=sflag, size = 0x4, scoped, tag = 'scoped memory for tpu_custom_call.1']
    #allocation4 [shape = 's32[1]{0}', space=sflag, size = 0x4, scoped, tag = 'scoped memory for tpu_custom_call.1']
    #allocation5 [shape = 'u8[32768]{0}', space=vmem, size = 0x8000, scoped, tag = 'input window, operand 1, single buffered']
    #allocation6 [shape = 's32[1]{0}', space=sflag, size = 0x4, scoped, tag = 'scoped memory for tpu_custom_call.1']
    #allocation7 [shape = 'u8[32768]{0}', space=vmem, size = 0x8000, scoped, tag = 'input window, operand 3, single buffered']
    #allocation8 [shape = 'u8[8192]{0}', space=vmem, size = 0x2000, scoped, tag = 'output window, operand 0, single buffered']
    %10 = vsyncpa [#allocation3], 0
    %11 = vsyncpa [#allocation6], 0
    %12 = vsyncpa [#allocation4], 0
    // Predicated region
    $region2: #{tpu_custom_call.1} parent=1 // pred_check
      _
    $region3: #{tpu_custom_call.1} parent=1 // pred_check_branch
      %14 = sbr.rel (0) target = $region5
    $region4: #{tpu_custom_call.1} parent=1 // pred_region
      %s16 = ssub.s32 256, 256
      %17 = vsyncadd [#allocation3], %s16
      %s18 = sshll.u32 [#allocation2], 4
      %s19 = int_to_ptr.vmem [resolvable:$true] %s18
      %24 = dma.hbm_to_vmem [thread:$0]  %s0, 256, %s19, [#allocation3], 128, 128, 8
    $region5: #{tpu_custom_call.1} parent=1 // pred_fallthru
      _
    // Predicated region
    $region6: #{tpu_custom_call.1} parent=1 // pred_check
      _
    $region7: #{tpu_custom_call.1} parent=1 // pred_check_branch
      %26 = sbr.rel (0) target = $region9
    $region8: #{tpu_custom_call.1} parent=1 // pred_region
      %s28 = ssub.s32 1024, 1024
      %29 = vsyncadd [#allocation6], %s28
      %s30 = sshll.u32 [#allocation5], 4
      %s31 = int_to_ptr.vmem [resolvable:$true] %s30
      %36 = dma.hbm_to_vmem [thread:$0]  %s1, 1024, %s31, [#allocation6], 64, 64, 4
    $region9: #{tpu_custom_call.1} parent=1 // pred_fallthru
      _
    // Predicated region
    $region10: #{tpu_custom_call.1} parent=1 // pred_check
      _
    $region11: #{tpu_custom_call.1} parent=1 // pred_check_branch
      %38 = sbr.rel (0) target = $region13
    $region12: #{tpu_custom_call.1} parent=1 // pred_region
      _
    $region13: #{tpu_custom_call.1} parent=1 // pred_fallthru
      _
    // Predicated region
    $region14: #{tpu_custom_call.1} parent=1 // pred_check
      _
    $region15: #{tpu_custom_call.1} parent=1 // pred_check_branch
      %40 = sbr.rel (0) target = $region17
    $region16: #{tpu_custom_call.1} parent=1 // pred_region
      %s42 = ssub.s32 1024, 1024
      %43 = vsyncadd [#allocation6], %s42
      %s44 = sshll.u32 [#allocation7], 4
      %s45 = int_to_ptr.vmem [resolvable:$true] %s44
      %50 = dma.hbm_to_vmem [thread:$0]  %s3, 1024, %s45, [#allocation6], 64, 64, 4
    $region17: #{tpu_custom_call.1} parent=1 // pred_fallthru
      _
    // Predicated region
    $region18: #{tpu_custom_call.1} parent=1 // pred_check
      _
    $region19: #{tpu_custom_call.1} parent=1 // pred_check_branch
      %52 = sbr.rel (0) target = $region21
    $region20: #{tpu_custom_call.1} parent=1 // pred_region
      _
    $region21: #{tpu_custom_call.1} parent=1 // pred_fallthru
      _
    // Predicated region
    $region22: #{tpu_custom_call.1} parent=1 // pred_check
      _
    $region23: #{tpu_custom_call.1} parent=1 // pred_check_branch
      %54 = sbr.rel (0) target = $region25
    $region24: #{tpu_custom_call.1} parent=1 // pred_region
      %55 = dma.done [#allocation3], 256
    $region25: #{tpu_custom_call.1} parent=1 // pred_fallthru
      _
    // Predicated region
    $region26: #{tpu_custom_call.1} parent=1 // pred_check
      _
    $region27: #{tpu_custom_call.1} parent=1 // pred_check_branch
      %57 = sbr.rel (0) target = $region29
    $region28: #{tpu_custom_call.1} parent=1 // pred_region
      %58 = dma.done [#allocation6], 1024
    $region29: #{tpu_custom_call.1} parent=1 // pred_fallthru
      _
    // Predicated region
    $region30: #{tpu_custom_call.1} parent=1 // pred_check
      _
    $region31: #{tpu_custom_call.1} parent=1 // pred_check_branch
      %60 = sbr.rel (0) target = $region33
    $region32: #{tpu_custom_call.1} parent=1 // pred_region
      %61 = dma.done [#allocation6], 1024
    $region33: #{tpu_custom_call.1} parent=1 // pred_fallthru
      _
    %v63 = vld [vmem:[#allocation2] sm:$0xff]
    %v64 = vld [vmem:[#allocation2 + $0x8] sm:$0xff]
    %v65 = vpack.c.bf16 %v64, %v63
    %v66 = vld [vmem:[#allocation5] sm:$0xf]
    %v67 = vld [vmem:[#allocation5 + $0x4] sm:$0xf]
    %v68 = vld [vmem:[#allocation5 + $0x8] sm:$0xf]
    %v69 = vld [vmem:[#allocation5 + $0xc] sm:$0xf]
    %v70 = vld [vmem:[#allocation5 + $0x10] sm:$0xf]
    %v71 = vld [vmem:[#allocation5 + $0x14] sm:$0xf]
    %v72 = vld [vmem:[#allocation5 + $0x18] sm:$0xf]
    %v73 = vld [vmem:[#allocation5 + $0x1c] sm:$0xf]
    %v74 = vld [vmem:[#allocation5 + $0x20] sm:$0xf]
    %v75 = vld [vmem:[#allocation5 + $0x24] sm:$0xf]
    %v76 = vld [vmem:[#allocation5 + $0x28] sm:$0xf]
    %v77 = vld [vmem:[#allocation5 + $0x2c] sm:$0xf]
    %v78 = vld [vmem:[#allocation5 + $0x30] sm:$0xf]
    %v79 = vld [vmem:[#allocation5 + $0x34] sm:$0xf]
    %v80 = vld [vmem:[#allocation5 + $0x38] sm:$0xf]
    %v81 = vld [vmem:[#allocation5 + $0x3c] sm:$0xf]
    %v82 = vld [vmem:[%s2] sm:$0x1]
    %v84 = vlaneseq
    %v85 = vshrl.u32 %v84, 7
    %v86 = vsub.s32 0, %v85
    %v87 = vrot.slane %v82, %v86
    %v105 = vunpack.c.l.b16 %v66
    %v106 = vunpack.c.l.b16 %v67
    %v107 = vunpack.c.l.b16 %v68
    %v108 = vunpack.c.l.b16 %v69
    %v109 = vunpack.c.l.b16 %v70
    %v110 = vunpack.c.l.b16 %v71
    %v111 = vunpack.c.l.b16 %v72
    %v112 = vunpack.c.l.b16 %v73
    %v113 = vunpack.c.l.b16 %v74
    %v114 = vunpack.c.l.b16 %v75
    %v115 = vunpack.c.l.b16 %v76
    %v116 = vunpack.c.l.b16 %v77
    %v117 = vunpack.c.l.b16 %v78
    %v118 = vunpack.c.l.b16 %v79
    %v119 = vunpack.c.l.b16 %v80
    %v120 = vunpack.c.l.b16 %v81
    %v121 = vpack.c.b16 %v106, %v105
    %v122 = vpack.c.b16 %v108, %v107
    %v123 = vpack.c.b16 %v110, %v109
    %v124 = vpack.c.b16 %v112, %v111
    %v125 = vpack.c.b16 %v114, %v113
    %v126 = vpack.c.b16 %v116, %v115
    %v127 = vpack.c.b16 %v118, %v117
    %v128 = vpack.c.b16 %v120, %v119
    %137 = vmatprep.subr.bf16.mxu0 0
    %138 = vmatpush1.bf16.msra.mxu0 %v121
    %139 = vmatprep.subr.bf16.mxu0 0
    %140 = vmatpush1.bf16.msra.mxu0 %v122
    %141 = vmatprep.subr.bf16.mxu0 0
    %142 = vmatpush1.bf16.msra.mxu0 %v123
    %143 = vmatprep.subr.bf16.mxu0 0
    %144 = vmatpush1.bf16.msra.mxu0 %v124
    %145 = vmatprep.subr.bf16.mxu0 0
    %146 = vmatpush1.bf16.msra.mxu0 %v125
    %147 = vmatprep.subr.bf16.mxu0 0
    %148 = vmatpush1.bf16.msra.mxu0 %v126
    %149 = vmatprep.subr.bf16.mxu0 0
    %150 = vmatpush1.bf16.msra.mxu0 %v127
    %151 = vmatprep.subr.bf16.mxu0 0
    %152 = vmatpush1.bf16.msra.mxu0 %v128
    %153 = vmatprep.subr.bf16.mxu0 0
    %154 = vmatpush1.bf16.msra.mxu0 0
    %155 = vmatprep.subr.bf16.mxu0 0
    %156 = vmatpush1.bf16.msra.mxu0 0
    %157 = vmatprep.subr.bf16.mxu0 0
    %158 = vmatpush1.bf16.msra.mxu0 0
    %159 = vmatprep.subr.bf16.mxu0 0
    %160 = vmatpush1.bf16.msra.mxu0 0
    %161 = vmatprep.subr.bf16.mxu0 0
    %162 = vmatpush1.bf16.msra.mxu0 0
    %163 = vmatprep.subr.bf16.mxu0 0
    %164 = vmatpush1.bf16.msra.mxu0 0
    %165 = vmatprep.subr.bf16.mxu0 0
    %166 = vmatpush1.bf16.msra.mxu0 0
    %167 = vmatprep.subr.bf16.mxu0 0
    %168 = vmatpush1.bf16.msra.mxu0 0
    %169 = vmatprep.mubr.bf16.mxu0 0
    %170 = vmatmul.mubr.bf16.gmra.mrb[0].mxu0 %v65
    %v171 = vpop.f32.mrb[0].mxu0
    %v172 = vadd.f32 %v87, %v171
    %v173 = vpop.f32.mrb[0].mxu0
    %v174 = vpop.f32.mrb[0].mxu0
    %v175 = vadd.f32 %v87, %v174
    %v176 = vpop.f32.mrb[0].mxu0
    %177 = vdwg.mxu0
    %v178 = vmul.f32 %v172, 0.5
    %v179 = vmul.f32 %v175, 0.5
    %v180 = vmul.f32 %v172, %v172
    %v181 = vmul.f32 %v175, %v175
    %v182 = vmul.f32 %v180, %v172
    %v183 = vmul.f32 %v181, %v175
    %v184 = vmul.f32 %v182, 0.044715
    %v185 = vmul.f32 %v183, 0.044715
    %v186 = vadd.f32 %v172, %v184
    %v187 = vadd.f32 %v175, %v185
    %v188 = vmul.f32 %v186, 0.7978846
    %v189 = vmul.f32 %v187, 0.7978846
    %v190 = vtanh.pop %v188
    %v191 = vtanh.pop %v189
    %v192 = vadd.f32 %v190, 1.0
    %v193 = vadd.f32 %v191, 1.0
    %v194 = vmul.f32 %v178, %v192
    %v195 = vmul.f32 %v179, %v193
    %v196 = vpack.c.bf16 %v195, %v194
    %v197 = vld [vmem:[#allocation7] sm:$0xf]
    %v198 = vld [vmem:[#allocation7 + $0x4] sm:$0xf]
    %v199 = vld [vmem:[#allocation7 + $0x8] sm:$0xf]
    %v200 = vld [vmem:[#allocation7 + $0xc] sm:$0xf]
    %v201 = vld [vmem:[#allocation7 + $0x10] sm:$0xf]
    %v202 = vld [vmem:[#allocation7 + $0x14] sm:$0xf]
    %v203 = vld [vmem:[#allocation7 + $0x18] sm:$0xf]
    %v204 = vld [vmem:[#allocation7 + $0x1c] sm:$0xf]
    %v205 = vld [vmem:[#allocation7 + $0x20] sm:$0xf]
    %v206 = vld [vmem:[#allocation7 + $0x24] sm:$0xf]
    %v207 = vld [vmem:[#allocation7 + $0x28] sm:$0xf]
    %v208 = vld [vmem:[#allocation7 + $0x2c] sm:$0xf]
    %v209 = vld [vmem:[#allocation7 + $0x30] sm:$0xf]
    %v210 = vld [vmem:[#allocation7 + $0x34] sm:$0xf]
    %v211 = vld [vmem:[#allocation7 + $0x38] sm:$0xf]
    %v212 = vld [vmem:[#allocation7 + $0x3c] sm:$0xf]
    %v213 = vld [vmem:[%s4] sm:$0x1]
    %v215 = vlaneseq
    %v216 = vshrl.u32 %v215, 7
    %v217 = vsub.s32 0, %v216
    %v218 = vrot.slane %v213, %v217
    %v236 = vunpack.c.l.b16 %v197
    %v237 = vunpack.c.l.b16 %v198
    %v238 = vunpack.c.l.b16 %v199
    %v239 = vunpack.c.l.b16 %v200
    %v240 = vunpack.c.l.b16 %v201
    %v241 = vunpack.c.l.b16 %v202
    %v242 = vunpack.c.l.b16 %v203
    %v243 = vunpack.c.l.b16 %v204
    %v244 = vunpack.c.l.b16 %v205
    %v245 = vunpack.c.l.b16 %v206
    %v246 = vunpack.c.l.b16 %v207
    %v247 = vunpack.c.l.b16 %v208
    %v248 = vunpack.c.l.b16 %v209
    %v249 = vunpack.c.l.b16 %v210
    %v250 = vunpack.c.l.b16 %v211
    %v251 = vunpack.c.l.b16 %v212
    %v252 = vpack.c.b16 %v237, %v236
    %v253 = vpack.c.b16 %v239, %v238
    %v254 = vpack.c.b16 %v241, %v240
    %v255 = vpack.c.b16 %v243, %v242
    %v256 = vpack.c.b16 %v245, %v244
    %v257 = vpack.c.b16 %v247, %v246
    %v258 = vpack.c.b16 %v249, %v248
    %v259 = vpack.c.b16 %v251, %v250
    %268 = vmatprep.subr.bf16.mxu0 0
    %269 = vmatpush1.bf16.msra.mxu0 %v252
    %270 = vmatprep.subr.bf16.mxu0 0
    %271 = vmatpush1.bf16.msra.mxu0 %v253
    %272 = vmatprep.subr.bf16.mxu0 0
    %273 = vmatpush1.bf16.msra.mxu0 %v254
    %274 = vmatprep.subr.bf16.mxu0 0
    %275 = vmatpush1.bf16.msra.mxu0 %v255
    %276 = vmatprep.subr.bf16.mxu0 0
    %277 = vmatpush1.bf16.msra.mxu0 %v256
    %278 = vmatprep.subr.bf16.mxu0 0
    %279 = vmatpush1.bf16.msra.mxu0 %v257
    %280 = vmatprep.subr.bf16.mxu0 0
    %281 = vmatpush1.bf16.msra.mxu0 %v258
    %282 = vmatprep.subr.bf16.mxu0 0
    %283 = vmatpush1.bf16.msra.mxu0 %v259
    %284 = vmatprep.subr.bf16.mxu0 0
    %285 = vmatpush1.bf16.msra.mxu0 0
    %286 = vmatprep.subr.bf16.mxu0 0
    %287 = vmatpush1.bf16.msra.mxu0 0
    %288 = vmatprep.subr.bf16.mxu0 0
    %289 = vmatpush1.bf16.msra.mxu0 0
    %290 = vmatprep.subr.bf16.mxu0 0
    %291 = vmatpush1.bf16.msra.mxu0 0
    %292 = vmatprep.subr.bf16.mxu0 0
    %293 = vmatpush1.bf16.msra.mxu0 0
    %294 = vmatprep.subr.bf16.mxu0 0
    %295 = vmatpush1.bf16.msra.mxu0 0
    %296 = vmatprep.subr.bf16.mxu0 0
    %297 = vmatpush1.bf16.msra.mxu0 0
    %298 = vmatprep.subr.bf16.mxu0 0
    %299 = vmatpush1.bf16.msra.mxu0 0
    %300 = vmatprep.mubr.bf16.mxu0 0
    %301 = vmatmul.mubr.bf16.gmra.mrb[0].mxu0 %v196
    %v302 = vpop.f32.mrb[0].mxu0
    %v303 = vadd.f32 %v218, %v302
    %v304 = vpop.f32.mrb[0].mxu0
    %v305 = vpop.f32.mrb[0].mxu0
    %v306 = vadd.f32 %v218, %v305
    %v307 = vpop.f32.mrb[0].mxu0
    %308 = vdwg.mxu0
    %309 = vst [vmem:[#allocation8] sm:$0xff] %v303
    %310 = vst [vmem:[#allocation8 + $0x8] sm:$0xff] %v306
    // Predicated region
    $region34: #{tpu_custom_call.1} parent=1 // pred_check
      _
    $region35: #{tpu_custom_call.1} parent=1 // pred_check_branch
      %312 = sbr.rel (0) target = $region37
    $region36: #{tpu_custom_call.1} parent=1 // pred_region
      %s314 = ssub.s32 256, 256
      %315 = vsyncadd [#allocation4], %s314
      %s316 = sshll.u32 [#allocation8], 4
      %s317 = int_to_ptr.vmem [resolvable:$true] %s316
      %322 = dma.vmem_to_hbm [thread:$0]  %s317, 256, %s5, [#allocation4], 128, 128, 8
    $region37: #{tpu_custom_call.1} parent=1 // pred_fallthru
      _
    // Predicated region
    $region38: #{tpu_custom_call.1} parent=1 // pred_check
      _
    $region39: #{tpu_custom_call.1} parent=1 // pred_check_branch
      %324 = sbr.rel (0) target = $region41
    $region40: #{tpu_custom_call.1} parent=1 // pred_region
      %325 = dma.done [#allocation4], 256
    $region41: #{tpu_custom_call.1} parent=1 // pred_fallthru
      _
    %326 = vsyncpa [#allocation3], 1
    %327 = vsyncpa [#allocation6], 1
    %328 = vsyncpa [#allocation4], 1

</llo_original>
